<compile_context>
chip_gen: v7x
topology: tpu7x:2x2x1
jax: 0.10.0
libtpu: 0.0.40
codegen_flags: <defaults>
</compile_context>

<pallas_src>
import functools

import jax
import jax.numpy as jnp
from jax import lax
from jax.experimental import pallas as pl
from jax.experimental.pallas import tpu as pltpu


# ------------------------------ helpers ------------------------------ #

def _cdiv(a, b):
    return -(-a // b)


def _round_up(v, m):
    return _cdiv(v, m) * m


def _vmem_limit_bytes():
    """Per-generation VMEM budget: ~75% of physical capacity.

    v5e/v6e (128 MiB) -> 96 MiB; v7x (64 MiB per TensorCore) -> 48 MiB.
    """
    cap = 64 * 1024 * 1024
    try:
        cap = int(pltpu.get_tpu_info().vmem_capacity_bytes)
    except Exception:
        pass
    return max(32 * 1024 * 1024, (cap * 3) // 4)


def _pick_tiling(n, bc_pad, itemsize, limit):
    """Choose the K tile (tk), per-slice K steps and slice count.

    tk is sized by BYTES: the streamed (bc_pad, tk) F block targets ~8 MiB,
    bounded by the VMEM budget after accounting for the resident f32
    partial-gram block and headroom.  h*w is then zero-padded up to
    num_slices * k_per_slice * tk (exact for a gram matrix).
    """
    n_128 = _round_up(n, 128)
    acc_bytes = 2 * bc_pad * bc_pad * 4            # partial-gram output buffers
    headroom = 4 * 1024 * 1024                     # Mosaic internal scratch etc.
    f_budget = max(128 * bc_pad * itemsize, (limit - acc_bytes - headroom) // 2)
    target_bytes = min(8 * 1024 * 1024, f_budget)
    tk = max(128, (target_bytes // (bc_pad * itemsize)) // 128 * 128)
    tk = min(tk, n_128)
    k_blocks = _cdiv(n_128, tk)
    # Split the reduction over 2 slices so v7x's second TensorCore gets half
    # the K range (just a short serial loop on 1-TC chips).
    num_slices = 2 if k_blocks >= 2 else 1
    k_blocks = _round_up(k_blocks, num_slices)
    tk = _round_up(_cdiv(n_128, k_blocks), 128)    # re-balance -> minimal padding
    k_per_slice = k_blocks // num_slices
    n_pad = k_blocks * tk
    return tk, k_per_slice, num_slices, n_pad


def _prepare(x, limit):
    """NCHW -> (bc_pad, n_pad) feature matrix in the NATIVE dtype (glue only)."""
    b, c, h, w = x.shape
    bc, n = b * c, h * w
    denom = float(b * c * h * w)
    feats = x.reshape(bc, n)                       # no dtype upcast
    itemsize = feats.dtype.itemsize
    # Rows: only pad (quadratic + an extra HBM round trip) when the matmul is
    # large enough to be MXU-bound; otherwise a full-dim leading block is legal.
    bc_pad = _round_up(bc, 128) if bc >= 256 else bc
    tk, k_per_slice, num_slices, n_pad = _pick_tiling(n, bc_pad, itemsize, limit)
    if bc_pad != bc or n_pad != n:
        feats = jnp.pad(feats, ((0, bc_pad - bc), (0, n_pad - n)))
    return feats, bc, bc_pad, denom, tk, k_per_slice, num_slices


# ------------------------------ kernels ------------------------------ #

def _partial_gram_kernel(f_ref, g_ref):
    """Accumulate F_k @ F_k^T into this slice's VMEM-resident f32 partial gram."""
    k = pl.program_id(1)

    @pl.when(k == 0)
    def _():
        g_ref[...] = jnp.zeros_like(g_ref)

    f = f_ref[...]                                 # native dtype (f32 / bf16 / ...)
    # Contract the last axes of both operands: F @ F^T on the MXU's
    # transposed-RHS path, no per-K-step XLU transpose of the F tile.
    # (If a bundle dump ever shows a vxpose here, switch to
    #  pl.dot(f, f, trans_b=True).)
    g_ref[...] += lax.dot_general(
        f, f,
        dimension_numbers=(((1,), (1,)), ((), ())),
        preferred_element_type=jnp.float32)


def _finalize_gram_kernel(p_ref, g_ref, *, inv_denom):
    """Sum the per-slice partial grams and apply the 1/(b*c*h*w) scale."""
    g_ref[...] = jnp.sum(p_ref[...], axis=0) * inv_denom


def _finalize_loss_kernel(p_ref, t_ref, g_ref, loss_ref, *, inv_denom, inv_count):
    """Sum partial grams, scale, and compute MSE against the (padded) target."""
    g = jnp.sum(p_ref[...], axis=0) * inv_denom
    g_ref[...] = g
    diff = g - t_ref[...]
    # Padded rows/cols are zero in BOTH grams -> contribute 0 to the sum;
    # divide by the true bc*bc element count for exact MSE semantics.
    loss_ref[0] = jnp.sum(diff * diff) * inv_count


# ------------------------------ wrappers ------------------------------ #

def _partial_grams(feats, bc_pad, tk, k_per_slice, num_slices, limit):
    """(num_slices, bc_pad, bc_pad) unscaled partial gram matrices."""
    return pl.pallas_call(
        _partial_gram_kernel,
        out_shape=jax.ShapeDtypeStruct((num_slices, bc_pad, bc_pad), jnp.float32),
        grid_spec=pltpu.PrefetchScalarGridSpec(
            num_scalar_prefetch=0,
            grid=(num_slices, k_per_slice),
            in_specs=[pl.BlockSpec(
                (bc_pad, tk), lambda s, k: (0, s * k_per_slice + k))],
            out_specs=pl.BlockSpec((None, bc_pad, bc_pad), lambda s, k: (s, 0, 0)),
        ),
        compiler_params=pltpu.CompilerParams(
            dimension_semantics=("parallel", "arbitrary"),
            vmem_limit_bytes=limit),
    )(feats)


def gram_matrix_pallas(x):
    """gram_matrix(x) for x in NCHW (same semantics as the torch helper)."""
    limit = _vmem_limit_bytes()
    feats, bc, bc_pad, denom, tk, kps, ns = _prepare(x, limit)
    partials = _partial_grams(feats, bc_pad, tk, kps, ns, limit)
    g = pl.pallas_call(
        functools.partial(_finalize_gram_kernel, inv_denom=1.0 / denom),
        out_shape=jax.ShapeDtypeStruct((bc_pad, bc_pad), jnp.float32),
        in_specs=[pl.BlockSpec(memory_space=pltpu.MemorySpace.VMEM)],
        out_specs=pl.BlockSpec(memory_space=pltpu.MemorySpace.VMEM),
        compiler_params=pltpu.CompilerParams(vmem_limit_bytes=limit),
    )(partials)
    return g[:bc, :bc]


class StyleLoss:
    """JAX/Pallas port of the PyTorch StyleLoss module."""

    def __init__(self, target_feature):
        b, c, _, _ = target_feature.shape
        self._bc = b * c
        # Target gram computed once at construction (detached constant),
        # stored UNPADDED; it is (cheaply) zero-padded to match x's row
        # padding at call time so both grams share identical padding.
        self.target = gram_matrix_pallas(target_feature)
        self.G = None
        self.loss = None

    def __call__(self, x):
        b, c, _, _ = x.shape
        bc = b * c
        assert bc == self._bc, (
            f"StyleLoss: x has b*c={bc}, target was built with b*c={self._bc}")

        limit = _vmem_limit_bytes()
        feats, bc, bc_pad, denom, tk, kps, ns = _prepare(x, limit)
        partials = _partial_grams(feats, bc_pad, tk, kps, ns, limit)

        target = self.target
        if bc_pad != bc:
            target = jnp.pad(target, ((0, bc_pad - bc), (0, bc_pad - bc)))

        kernel = functools.partial(
            _finalize_loss_kernel,
            inv_denom=1.0 / denom,
            inv_count=1.0 / float(bc * bc))
        g, loss = pl.pallas_call(
            kernel,
            out_shape=(
                jax.ShapeDtypeStruct((bc_pad, bc_pad), jnp.float32),
                jax.ShapeDtypeStruct((1,), jnp.float32),
            ),
            in_specs=[
                pl.BlockSpec(memory_space=pltpu.MemorySpace.VMEM),
                pl.BlockSpec(memory_space=pltpu.MemorySpace.VMEM),
            ],
            out_specs=(
                pl.BlockSpec(memory_space=pltpu.MemorySpace.VMEM),
                pl.BlockSpec(memory_space=pltpu.MemorySpace.SMEM),
            ),
            compiler_params=pltpu.CompilerParams(vmem_limit_bytes=limit),
        )(partials, target)

        self.G = g[:bc, :bc]
        self.loss = loss[0]
        return x   # forward returns its input unchanged, like the nn.Module


# ------------------------ reference (plain JAX) ------------------------ #

def _gram_ref(x):
    b, c, h, w = x.shape
    f = x.reshape(b * c, h * w).astype(jnp.float32)
    return (f @ f.T) / (b * c * h * w)


if __name__ == "__main__":
    key = jax.random.PRNGKey(0)
    k1, k2 = jax.random.split(key)

    # small NCHW feature maps: batch=2, channels=4, spatial=16x16
    target_feature = jax.random.normal(k1, (2, 4, 16, 16), dtype=jnp.float32)
    x = jax.random.normal(k2, (2, 4, 16, 16), dtype=jnp.float32)

    module = StyleLoss(target_feature)
    out = module(x)
    out = jax.block_until_ready(out)
    loss = jax.block_until_ready(module.loss)

    # correctness check against plain-JAX reference
    G_ref = _gram_ref(x)
    T_ref = _gram_ref(target_feature)
    loss_ref = jnp.mean((G_ref - T_ref) ** 2)
    assert jnp.allclose(out, x), "forward must return x unchanged"
    assert jnp.allclose(module.target, T_ref, atol=1e-5, rtol=1e-5)
    assert jnp.allclose(module.G, G_ref, atol=1e-5, rtol=1e-5)
    assert jnp.allclose(loss, loss_ref, atol=1e-5, rtol=1e-5)

    print("KERNEL_OK")
</pallas_src>

<mosaic_0001>
module attributes {stable_mosaic.version = 11 : i64} {
  func.func @_partial_gram_kernel(%arg0: i32, %arg1: i32, %arg2: memref<8x256xf32, #tpu.memory_space<vmem>>, %arg3: memref<1x8x8xf32, #tpu.memory_space<vmem>>) attributes {dimension_semantics = [#tpu.dimension_semantics<parallel>, #tpu.dimension_semantics<arbitrary>], iteration_bounds = array<i64: 1, 1>, scalar_prefetch = 0 : i64, scratch_operands = 0 : i64, tpu.core_type = #tpu.core_type<tc>, window_params = [{transform_indices = @transform_0, window_bounds = array<i64: 8, 256>}, {transform_indices = @transform_1, window_bounds = array<i64: 1, 8, 8>}]} {
    %c0_i32 = arith.constant 0 : i32
    %0 = arith.cmpi eq, %arg1, %c0_i32 : i32
    %1 = arith.extui %0 : i1 to i32
    %c0_i32_0 = arith.constant 0 : i32
    %2 = arith.cmpi ne, %1, %c0_i32_0 : i32
    scf.if %2 {
      %cst_8 = arith.constant 0.000000e+00 : f32
      %11 = vector.broadcast %cst_8 : f32 to vector<8x8xf32>
      %c0_9 = arith.constant 0 : index
      %c0_10 = arith.constant 0 : index
      %c0_11 = arith.constant 0 : index
      %12 = vector.load %arg3[%c0_9, %c0_10, %c0_11] : memref<1x8x8xf32, #tpu.memory_space<vmem>>, vector<1x8x8xf32>
      %13 = vector.shape_cast %12 : vector<1x8x8xf32> to vector<8x8xf32>
      %14 = vector.shape_cast %11 : vector<8x8xf32> to vector<1x8x8xf32>
      tpu.vector_store %arg3[%c0_9, %c0_10, %c0_11], %14 {strides = array<i32>} : memref<1x8x8xf32, #tpu.memory_space<vmem>>, vector<1x8x8xf32>,
    } else {
    }
    %c0 = arith.constant 0 : index
    %c0_1 = arith.constant 0 : index
    %3 = vector.load %arg2[%c0, %c0_1] : memref<8x256xf32, #tpu.memory_space<vmem>>, vector<8x256xf32>
    %c0_2 = arith.constant 0 : index
    %c0_3 = arith.constant 0 : index
    %c0_4 = arith.constant 0 : index
    %4 = vector.load %arg3[%c0_2, %c0_3, %c0_4] : memref<1x8x8xf32, #tpu.memory_space<vmem>>, vector<1x8x8xf32>
    %5 = vector.shape_cast %4 : vector<1x8x8xf32> to vector<8x8xf32>
    %cst = arith.constant dense<0.000000e+00> : vector<8x8xf32>
    %6 = tpu.matmul %3, %3, %cst {dimension_numbers = #tpu.dot_dimension_numbers<[1], [1], [0], [0], [0, 0, 1, 0], [], []>} : vector<8x256xf32>, vector<8x256xf32>, vector<8x8xf32> -> vector<8x8xf32>
    %7 = arith.addf %5, %6 : vector<8x8xf32>
    %c0_5 = arith.constant 0 : index
    %c0_6 = arith.constant 0 : index
    %c0_7 = arith.constant 0 : index
    %8 = vector.load %arg3[%c0_5, %c0_6, %c0_7] : memref<1x8x8xf32, #tpu.memory_space<vmem>>, vector<1x8x8xf32>
    %9 = vector.shape_cast %8 : vector<1x8x8xf32> to vector<8x8xf32>
    %10 = vector.shape_cast %7 : vector<8x8xf32> to vector<1x8x8xf32>
    tpu.vector_store %arg3[%c0_5, %c0_6, %c0_7], %10 {strides = array<i32>} : memref<1x8x8xf32, #tpu.memory_space<vmem>>, vector<1x8x8xf32>,
    return
  }
  func.func @transform_0(%arg0: i32, %arg1: i32) -> (i32, i32) {
    %c1_i32 = arith.constant 1 : i32
    %0 = arith.muli %arg0, %c1_i32 : i32
    %1 = arith.addi %0, %arg1 : i32
    %c0_i32 = arith.constant 0 : i32
    %c0_i32_0 = arith.constant 0 : i32
    return %c0_i32, %1 : i32, i32
  }
  func.func @transform_1(%arg0: i32, %arg1: i32) -> (i32, i32, i32) {
    %c0_i32 = arith.constant 0 : i32
    %c0_i32_0 = arith.constant 0 : i32
    %c0_i32_1 = arith.constant 0 : i32
    return %arg0, %c0_i32, %c0_i32_0 : i32, i32, i32
  }
}

</mosaic_0001>

<llo_original>
// kernel: tpu_custom_call.1
$region0: #{tpu_custom_call.1}
  #allocation0 [shape = 'u32[]', space=smem, size = 0x4, offset = 0x4, fixed_abs, tag = 'smem constant byte address 0x4 - core index']
  #allocation1 [shape = 'u32[144,128]{1,0:T(1,128)}', space=vmem, size = 0x12000, scoped, tag = 'internal scratch']
  %s0 = inlined_call_operand.hbm [shape: f32[8,256], index: 0, kind: input, shape index: {}]
  %s1 = inlined_call_operand.hbm [shape: f32[1,8,8], index: 1, kind: output, shape index: {}]
  %s2 = sld [smem:[#allocation0]]
  $region22: #{tpu_custom_call.1} parent=0
    _
  %s4 = ssub.s32 1, %s2
  %s5 = scalar_select 0, %s4, %s2
  $region1: #{tpu_custom_call.1} parent=0
    #allocation2 [shape = 'u8[8192]{0}', space=vmem, size = 0x2000, scoped, tag = 'input window, operand 0, single buffered']
    #allocation3 [shape = 's32[1]{0}', space=sflag, size = 0x4, scoped, tag = 'scoped memory for tpu_custom_call.1']
    #allocation4 [shape = 's32[1]{0}', space=sflag, size = 0x4, scoped, tag = 'scoped memory for tpu_custom_call.1']
    #allocation5 [shape = 'u8[4096]{0}', space=vmem, size = 0x1000, scoped, tag = 'output window, operand 0, single buffered']
    %6 = vsyncpa [#allocation3], 0
    %7 = vsyncpa [#allocation4], 0
    // Predicated region
    $region2: #{tpu_custom_call.1} parent=1 // pred_check
      _
    $region3: #{tpu_custom_call.1} parent=1 // pred_check_branch
      %9 = sbr.rel (0) target = $region5
    $region4: #{tpu_custom_call.1} parent=1 // pred_region
      %s10 = sadd.s32 0, 0
      %s11 = smul.u32 2, %s10
      %s13 = ssub.s32 256, 256
      %14 = vsyncadd [#allocation3], %s13
      %s15 = smul.addr %s11, 128
      %s16 = scalar_lea.hbm %s0, %s15
      %s18 = sshll.u32 [#allocation2], 4
      %s19 = int_to_ptr.vmem [resolvable:$true] %s18
      %21 = dma.hbm_to_vmem [thread:$0]  %s16, 256, %s19, [#allocation3]
    $region5: #{tpu_custom_call.1} parent=1 // pred_fallthru
      _
    // Predicated region
    $region6: #{tpu_custom_call.1} parent=1 // pred_check
      _
    $region7: #{tpu_custom_call.1} parent=1 // pred_check_branch
      %23 = sbr.rel (0) target = $region9
    $region8: #{tpu_custom_call.1} parent=1 // pred_region
      %24 = dma.done [#allocation3], 256
    $region9: #{tpu_custom_call.1} parent=1 // pred_fallthru
      _
    %s25 = sadd.s32 0, 0
    %s26 = smul.u32 2, %s25
    %p27 = scmp.eq.s32.totalorder 0, 0
    // Predicated region
    $region10: #{tpu_custom_call.1} parent=1 // pred_check
      %p28 = pneg %p27
    $region11: #{tpu_custom_call.1} parent=1 // pred_check_branch
      %30 = sbr.rel (%p28) target = $region13
    $region12: #{tpu_custom_call.1} parent=1 // pred_region
      %vm31 = vcmask 64512
      %32 = vst.msk [vmem:[#allocation5] sm:$0xff] %vm31, 0.0
    $region13: #{tpu_custom_call.1} parent=1 // pred_fallthru
      _
    %v33 = vld [vmem:[#allocation2] sm:$0xff]
    %v34 = vld [vmem:[#allocation2 + $0x8] sm:$0xff]
    %v35 = vld [vmem:[#allocation5] sm:$0xff]
    %36 = vmatprep.subr.mxu0 %v34
    %37 = vmatpush1.xpose.msra.mxu0 %v33
    %38 = vmatprep.subr.mxu0 0.0
    %39 = vmatpush1.xpose.msra.mxu0 0.0
    %40 = vmatprep.subr.mxu0 0.0
    %41 = vmatpush1.xpose.msra.mxu0 0.0
    %42 = vmatprep.subr.mxu0 0.0
    %43 = vmatpush1.xpose.msra.mxu0 0.0
    %44 = vmatprep.subr.mxu0 0.0
    %45 = vmatpush1.xpose.msra.mxu0 0.0
    %46 = vmatprep.subr.mxu0 0.0
    %47 = vmatpush1.xpose.msra.mxu0 0.0
    %48 = vmatprep.subr.mxu0 0.0
    %49 = vmatpush1.xpose.msra.mxu0 0.0
    %50 = vmatprep.subr.mxu0 0.0
    %51 = vmatpush1.xpose.msra.mxu0 0.0
    %52 = vmatprep.subr.mxu0 0.0
    %53 = vmatpush1.xpose.msra.mxu0 0.0
    %54 = vmatprep.subr.mxu0 0.0
    %55 = vmatpush1.xpose.msra.mxu0 0.0
    %56 = vmatprep.subr.mxu0 0.0
    %57 = vmatpush1.xpose.msra.mxu0 0.0
    %58 = vmatprep.subr.mxu0 0.0
    %59 = vmatpush1.xpose.msra.mxu0 0.0
    %60 = vmatprep.subr.mxu0 0.0
    %61 = vmatpush1.xpose.msra.mxu0 0.0
    %62 = vmatprep.subr.mxu0 0.0
    %63 = vmatpush1.xpose.msra.mxu0 0.0
    %64 = vmatprep.subr.mxu0 0.0
    %65 = vmatpush1.xpose.msra.mxu0 0.0
    %66 = vmatprep.subr.mxu0 0.0
    %67 = vmatpush1.xpose.msra.mxu0 0.0
    %68 = vmatprep.subr.mxu0 0.0
    %69 = vmatpush1.xpose.msra.mxu0 0.0
    %70 = vmatprep.subr.mxu0 0.0
    %71 = vmatpush1.xpose.msra.mxu0 0.0
    %72 = vmatprep.subr.mxu0 0.0
    %73 = vmatpush1.xpose.msra.mxu0 0.0
    %74 = vmatprep.subr.mxu0 0.0
    %75 = vmatpush1.xpose.msra.mxu0 0.0
    %76 = vmatprep.subr.mxu0 0.0
    %77 = vmatpush1.xpose.msra.mxu0 0.0
    %78 = vmatprep.subr.mxu0 0.0
    %79 = vmatpush1.xpose.msra.mxu0 0.0
    %80 = vmatprep.subr.mxu0 0.0
    %81 = vmatpush1.xpose.msra.mxu0 0.0
    %82 = vmatprep.subr.mxu0 0.0
    %83 = vmatpush1.xpose.msra.mxu0 0.0
    %84 = vmatprep.subr.mxu0 0.0
    %85 = vmatpush1.xpose.msra.mxu0 0.0
    %86 = vmatprep.subr.mxu0 0.0
    %87 = vmatpush1.xpose.msra.mxu0 0.0
    %88 = vmatprep.subr.mxu0 0.0
    %89 = vmatpush1.xpose.msra.mxu0 0.0
    %90 = vmatprep.subr.mxu0 0.0
    %91 = vmatpush1.xpose.msra.mxu0 0.0
    %92 = vmatprep.subr.mxu0 0.0
    %93 = vmatpush1.xpose.msra.mxu0 0.0
    %94 = vmatprep.subr.mxu0 0.0
    %95 = vmatpush1.xpose.msra.mxu0 0.0
    %96 = vmatprep.subr.mxu0 0.0
    %97 = vmatpush1.xpose.msra.mxu0 0.0
    %98 = vmatprep.subr.mxu0 0.0
    %99 = vmatpush1.xpose.msra.mxu0 0.0
    %100 = vmatprep.mubr.f32.mxu0 %v34
    %101 = vmatmul.mubr.f32.gmra.mrb[0].mxu0 %v33
    %v102 = vpop.f32.mrb[0].mxu0
    %v103 = vadd.f32 0.0, %v102
    %v104 = vpop.f32.mrb[0].mxu0
    %105 = vdwg.mxu0
    %v106 = vadd.f32 %v35, %v103
    %vm107 = vcmask 64512
    %108 = vst.msk [vmem:[#allocation5] sm:$0xff] %vm107, %v106
    // Predicated region
    $region14: #{tpu_custom_call.1} parent=1 // pred_check
      _
    $region15: #{tpu_custom_call.1} parent=1 // pred_check_branch
      %110 = sbr.rel (0) target = $region17
    $region16: #{tpu_custom_call.1} parent=1 // pred_region
      %s112 = ssub.s32 128, 128
      %113 = vsyncadd [#allocation4], %s112
      %s115 = sshll.u32 [#allocation5], 4
      %s116 = int_to_ptr.vmem [resolvable:$true] %s115
      %118 = dma.vmem_to_hbm [thread:$0]  %s116, 128, %s1, [#allocation4]
    $region17: #{tpu_custom_call.1} parent=1 // pred_fallthru
      _
    // Predicated region
    $region18: #{tpu_custom_call.1} parent=1 // pred_check
      _
    $region19: #{tpu_custom_call.1} parent=1 // pred_check_branch
      %120 = sbr.rel (0) target = $region21
    $region20: #{tpu_custom_call.1} parent=1 // pred_region
      %121 = dma.done [#allocation4], 128
    $region21: #{tpu_custom_call.1} parent=1 // pred_fallthru
      _
    %122 = vsyncpa [#allocation3], 1
    %123 = vsyncpa [#allocation4], 1

</llo_original>
